<compile_context>
chip_gen: v6e
topology: v6e:2x2x1
jax: 0.10.0
libtpu: 0.0.40
codegen_flags: <defaults>
</compile_context>

<pallas_src>
import jax
import jax.numpy as jnp
from jax.experimental import pallas as pl
from jax.experimental.pallas import tpu as pltpu

LPAD = 128  # pad the (tiny) num_tssp_labels class axis up to one full lane register


def _round_up(a, b):
    return (a + b - 1) // b * b


def _pick_tm(rows, H, itemsize, *, max_tm=2048, pipeline_budget=28 << 20):
    """Largest power-of-two row tile whose pipeline buffers fit the VMEM budget.

    Budget covers: double-buffered x (2*tm*H*itemsize), label tiles (lane-padded
    int32, 2*tm*512 upper bound), double-buffered W^T and a little fixed slack.
    28 MiB of pipeline buffers stays comfortably inside every chip's physical VMEM
    (128 MiB v5e/v6e, 64 MiB per-TC v7x) once vmem_limit_bytes is set explicitly.
    """
    fixed = 2 * H * LPAD * itemsize + (256 << 10)
    tm = max_tm
    while tm > 16 and (2 * tm * H * itemsize + 2 * tm * 512 + fixed) > pipeline_budget:
        tm //= 2
    return tm


def _make_tssp_kernel(steps, steps_per_core, tm, num_cores, labels_resident):
    def kernel(x_ref, lbl_ref, w_ref, b_ref, loss_ref, cnt_ref):
        if num_cores > 1:
            c = pl.program_id(0)   # core-split axis ("parallel")
            i = pl.program_id(1)   # row-tile reduction axis ("arbitrary")
            step = c * steps_per_core + i
        else:
            i = pl.program_id(0)
            step = i

        # Per-core (8,128) accumulator output blocks: same block for every inner step
        # -> VMEM resident across the reduction axis; init at i == 0.
        @pl.when(i == 0)
        def _init():
            loss_ref[...] = jnp.zeros_like(loss_ref)
            cnt_ref[...] = jnp.zeros_like(cnt_ref)

        def _body():
            if labels_resident:
                # Whole label column lives in VMEM (one DMA); slice the rows of this
                # tile in-kernel (tm is a multiple of 16 -> sublane-tile aligned).
                start = pl.multiple_of(step * tm, tm)
                lbl = lbl_ref[pl.ds(start, tm), :]            # (tm, 1) int32
            else:
                lbl = lbl_ref[...]                            # (tm, 1) int32

            # Classifier matmul on the MXU (bf16 or f32 in, f32 accumulate); padded class
            # lanes carry weight 0 / bias -1e30 so they never win the max nor add to the LSE.
            logits = jnp.dot(x_ref[...], w_ref[...],
                             preferred_element_type=jnp.float32) + b_ref[...]  # (tm, LPAD)

            # Numerically stable log-sum-exp over the class axis (lanes).
            m = jnp.max(logits, axis=-1, keepdims=True)                         # (tm, 1)
            lse = m + jnp.log(jnp.sum(jnp.exp(logits - m), axis=-1, keepdims=True))

            # One-hot hit mask: exactly one lane per valid row; -100 rows (incl. padded /
            # out-of-bounds tail rows of x) hit nothing, so garbage never leaks (select).
            col = jax.lax.broadcasted_iota(jnp.int32, logits.shape, 1)
            hit = (col == lbl) & (lbl != -100)                                  # (tm, LPAD)

            # Lane-dense accumulation: (tm,128) contribution -> (tm//8, 8, 128) is a
            # tile-preserving reshape (no data movement); axis-0 sum is pure VPU adds.
            loss_c = jnp.where(hit, lse - logits, 0.0)
            loss_ref[...] += loss_c.reshape(tm // 8, 8, LPAD).sum(axis=0)
            cnt_ref[...] += hit.astype(jnp.float32).reshape(tm // 8, 8, LPAD).sum(axis=0)

        if num_cores > 1:
            # Skip the (at most num_cores-1) overhanging steps whose block index was
            # clamped.  The clamp re-returns the previous step's block index, so no extra
            # x-tile DMA is issued for the skipped step.
            pl.when(step < steps)(_body)
        else:
            _body()

    return kernel


def tssp_forward(sent_token_mask, da_seq_output, da_sent_pair_orders,
                 weight, bias, *, num_tssp_labels, tssp_loss_weight,
                 tm=None, num_cores=1, labels_resident=None):
    """JAX/Pallas equivalent of TSSP.forward.

    num_cores: 1 on single-TensorCore chips (v5e/v6e); 2 on dual-TC chips (v7x).
    """
    if tssp_loss_weight == 0:
        # NOTE: the reference PyTorch returns an undefined `loss` here (a bug); return 0.
        return jnp.float32(0.0)

    # Valid positions are exactly label != -100 (positionally aligned with the mask in the
    # reference module), so the mask tensor does not need its own HBM->VMEM stream.
    del sent_token_mask

    B, T, H = da_seq_output.shape
    rows = B * T
    dtype = da_seq_output.dtype
    itemsize = jnp.dtype(dtype).itemsize

    # Row tile: as large as the VMEM pipeline budget allows, 16-aligned (bf16 sublane
    # packing + the tm//8 reshape), clamped for tiny inputs.
    if tm is None:
        tm = _pick_tm(rows, H, itemsize)
    tm = max(16, min(_round_up(tm, 16), _round_up(rows, 16)))

    steps = (rows + tm - 1) // tm
    steps_per_core = (steps + num_cores - 1) // num_cores

    # Activations: reshape only — no cast, no pad (tail rows masked in-kernel).
    x = da_seq_output.reshape(rows, H)

    # Labels: tiny (rows,1) int32 column; pad so its blocks never go out of bounds and the
    # padding value (-100) marks padded rows invalid.
    lbl = da_sent_pair_orders.reshape(rows, 1).astype(jnp.int32)
    rows_lbl = steps * tm
    if rows_lbl != rows:
        lbl = jnp.pad(lbl, ((0, rows_lbl - rows), (0, 0)), constant_values=-100)

    # Keep the whole label column VMEM-resident (one DMA) when its lane-padded layout cost
    # (rows_lbl * 512 B per buffer) is small; otherwise stream it per tile.
    if labels_resident is None:
        labels_resident = rows_lbl <= 2048

    # nn.Linear(H, L): logits = x @ W.T + b. Pre-transpose and lane-pad the class axis.
    # NOTE: labels in [num_tssp_labels, 128) that are not -100 would pick a padded lane
    # (logit -1e30) instead of erroring like torch CrossEntropyLoss.
    w_t = jnp.zeros((H, LPAD), dtype).at[:, :num_tssp_labels].set(weight.T.astype(dtype))
    b_p = jnp.full((1, LPAD), -1e30, jnp.float32).at[0, :num_tssp_labels].set(
        bias.astype(jnp.float32))

    if num_cores > 1:
        def row_block(c, i):
            # Clamp so overhanging steps re-use the previous (valid) block; their
            # contribution is skipped inside the kernel (pl.when).
            return jnp.minimum(c * steps_per_core + i, steps - 1)

        x_spec = pl.BlockSpec((tm, H), lambda c, i: (row_block(c, i), 0))
        if labels_resident:
            lbl_spec = pl.BlockSpec((rows_lbl, 1), lambda c, i: (0, 0))
        else:
            lbl_spec = pl.BlockSpec((tm, 1), lambda c, i: (row_block(c, i), 0))
        w_spec = pl.BlockSpec((H, LPAD), lambda c, i: (0, 0))
        b_spec = pl.BlockSpec((1, LPAD), lambda c, i: (0, 0))
        out_spec = pl.BlockSpec((8, LPAD), lambda c, i: (c, 0))
        grid = (num_cores, steps_per_core)
        dim_sem = ("parallel", "arbitrary")
    else:
        x_spec = pl.BlockSpec((tm, H), lambda i: (i, 0))
        if labels_resident:
            lbl_spec = pl.BlockSpec((rows_lbl, 1), lambda i: (0, 0))
        else:
            lbl_spec = pl.BlockSpec((tm, 1), lambda i: (i, 0))
        w_spec = pl.BlockSpec((H, LPAD), lambda i: (0, 0))
        b_spec = pl.BlockSpec((1, LPAD), lambda i: (0, 0))
        out_spec = pl.BlockSpec((8, LPAD), lambda i: (0, 0))
        grid = (steps,)
        dim_sem = ("arbitrary",)

    # Explicit VMEM budget (decouples tm from per-chip scoped defaults) + cost hint.
    lbl_vmem = (2 * rows_lbl * 512) if labels_resident else (2 * tm * 512)
    vmem_bytes = (2 * tm * H * itemsize            # x double-buffer
                  + lbl_vmem                       # labels (lane-padded int32)
                  + 2 * H * LPAD * itemsize        # W^T
                  + 2 * 8 * LPAD * 4               # bias (sublane-padded)
                  + 2 * 2 * 8 * LPAD * 4)          # loss/cnt accumulator blocks
    vmem_limit = min(int(vmem_bytes * 1.5) + (4 << 20), 64 << 20)

    cost = pl.CostEstimate(
        flops=2 * rows * H * LPAD,
        transcendentals=rows_lbl * (LPAD + 1),
        bytes_accessed=(rows * H * itemsize + rows_lbl * 4
                        + H * LPAD * itemsize + LPAD * 4
                        + num_cores * 2 * 8 * LPAD * 4))

    kernel = _make_tssp_kernel(steps, steps_per_core, tm, num_cores, labels_resident)

    loss_parts, cnt_parts = pl.pallas_call(
        kernel,
        out_shape=(jax.ShapeDtypeStruct((num_cores * 8, LPAD), jnp.float32),
                   jax.ShapeDtypeStruct((num_cores * 8, LPAD), jnp.float32)),
        grid_spec=pltpu.PrefetchScalarGridSpec(
            num_scalar_prefetch=0,
            grid=grid,
            in_specs=[x_spec, lbl_spec, w_spec, b_spec],
            out_specs=(out_spec, out_spec),
        ),
        compiler_params=pltpu.CompilerParams(
            dimension_semantics=dim_sem,
            vmem_limit_bytes=vmem_limit),
        cost_estimate=cost,
    )(x, lbl, w_t, b_p)

    total_loss = jnp.sum(loss_parts)
    total_cnt = jnp.sum(cnt_parts)
    # NOTE: if no position is valid this is 0/0 -> NaN, matching torch CrossEntropyLoss on
    # an empty selection.
    return jnp.float32(tssp_loss_weight) * (total_loss / total_cnt)


def _reference(da_seq_output, da_sent_pair_orders, weight, bias,
               num_tssp_labels, tssp_loss_weight):
    """Pure-JAX f32 reference mirroring the PyTorch semantics (masked CE mean)."""
    B, T, H = da_seq_output.shape
    feats = da_seq_output.reshape(-1, H).astype(jnp.float32)
    logits = feats @ weight.astype(jnp.float32).T + bias.astype(jnp.float32)
    lbls = da_sent_pair_orders.reshape(-1)
    mask = (lbls != -100).astype(jnp.float32)
    lse = jax.nn.logsumexp(logits, axis=-1)
    safe = jnp.clip(lbls, 0, num_tssp_labels - 1)
    picked = jnp.take_along_axis(logits, safe[:, None], axis=-1)[:, 0]
    return tssp_loss_weight * jnp.sum((lse - picked) * mask) / jnp.sum(mask)


if __name__ == "__main__":
    key = jax.random.PRNGKey(0)
    B, T, H, L = 2, 16, 32, 3          # batch, seq_len, hidden_size, num_tssp_labels
    tssp_loss_weight = 0.5
    k1, k2, k3, k4 = jax.random.split(key, 4)

    da_seq_output = jax.random.normal(k1, (B, T, H), dtype=jnp.float32)
    sent_token_mask = (jax.random.uniform(k2, (B, T)) < 0.4).astype(jnp.int32)
    sent_token_mask = sent_token_mask.at[0, 0].set(1)   # at least one sentence token
    labels_raw = jax.random.randint(k3, (B, T), 0, L)
    # labels align with sentence-token positions; -100 elsewhere (ignore_index)
    da_sent_pair_orders = jnp.where(sent_token_mask == 1, labels_raw, -100)

    # deterministic synthetic classifier params: nn.Linear(H, L) -> W:(L,H), b:(L,)
    weight = 0.02 * jax.random.normal(k4, (L, H), dtype=jnp.float32)
    bias = jnp.linspace(-0.1, 0.1, L, dtype=jnp.float32)

    ref = _reference(da_seq_output, da_sent_pair_orders, weight, bias, L, tssp_loss_weight)

    # f32 activations, single-core path, VMEM-resident labels
    out = tssp_forward(sent_token_mask, da_seq_output, da_sent_pair_orders,
                       weight, bias, num_tssp_labels=L,
                       tssp_loss_weight=tssp_loss_weight)
    out = jax.block_until_ready(out)
    assert jnp.allclose(out, ref, rtol=1e-5, atol=1e-5), (out, ref)

    # bf16 activations (fed straight to the MXU, f32 accumulate)
    out_bf16 = tssp_forward(sent_token_mask, da_seq_output.astype(jnp.bfloat16),
                            da_sent_pair_orders, weight, bias, num_tssp_labels=L,
                            tssp_loss_weight=tssp_loss_weight)
    out_bf16 = jax.block_until_ready(out_bf16)
    assert jnp.allclose(out_bf16, ref, rtol=2e-2, atol=2e-2), (out_bf16, ref)

    # dual-TensorCore split path (v7x-style) with streamed per-tile labels
    out_2c = tssp_forward(sent_token_mask, da_seq_output, da_sent_pair_orders,
                          weight, bias, num_tssp_labels=L,
                          tssp_loss_weight=tssp_loss_weight,
                          num_cores=2, labels_resident=False)
    out_2c = jax.block_until_ready(out_2c)
    assert jnp.allclose(out_2c, ref, rtol=1e-5, atol=1e-5), (out_2c, ref)

    print("KERNEL_OK")
</pallas_src>

<mosaic_0001>
module attributes {stable_mosaic.version = 11 : i64} {
  func.func @kernel(%arg0: i32, %arg1: memref<32x32xf32, #tpu.memory_space<vmem>>, %arg2: memref<32x1xi32, #tpu.memory_space<vmem>>, %arg3: memref<32x128xf32, #tpu.memory_space<vmem>>, %arg4: memref<1x128xf32, #tpu.memory_space<vmem>>, %arg5: memref<8x128xf32, #tpu.memory_space<vmem>>, %arg6: memref<8x128xf32, #tpu.memory_space<vmem>>) attributes {dimension_semantics = [#tpu.dimension_semantics<arbitrary>], iteration_bounds = array<i64: 1>, scalar_prefetch = 0 : i64, scratch_operands = 0 : i64, tpu.core_type = #tpu.core_type<tc>, window_params = [{transform_indices = @transform_0, window_bounds = array<i64: 32, 32>}, {pipeline_mode = #tpu.pipeline_mode<synchronous>, transform_indices = @transform_1, window_bounds = array<i64: 32, 1>}, {pipeline_mode = #tpu.pipeline_mode<synchronous>, transform_indices = @transform_2, window_bounds = array<i64: 32, 128>}, {pipeline_mode = #tpu.pipeline_mode<synchronous>, transform_indices = @transform_3, window_bounds = array<i64: 1, 128>}, {pipeline_mode = #tpu.pipeline_mode<synchronous>, transform_indices = @transform_4, window_bounds = array<i64: 8, 128>}, {pipeline_mode = #tpu.pipeline_mode<synchronous>, transform_indices = @transform_5, window_bounds = array<i64: 8, 128>}]} {
    %c0_i32 = arith.constant 0 : i32
    %0 = arith.cmpi eq, %arg0, %c0_i32 : i32
    %1 = arith.extui %0 : i1 to i32
    %c0_i32_0 = arith.constant 0 : i32
    %2 = arith.cmpi ne, %1, %c0_i32_0 : i32
    scf.if %2 {
      %cst_20 = arith.constant 0.000000e+00 : f32
      %45 = vector.broadcast %cst_20 : f32 to vector<8x128xf32>
      %c0_21 = arith.constant 0 : index
      %c0_22 = arith.constant 0 : index
      %46 = vector.load %arg5[%c0_21, %c0_22] : memref<8x128xf32, #tpu.memory_space<vmem>>, vector<8x128xf32>
      tpu.vector_store %arg5[%c0_21, %c0_22], %45 {strides = array<i32>} : memref<8x128xf32, #tpu.memory_space<vmem>>, vector<8x128xf32>,
      %cst_23 = arith.constant 0.000000e+00 : f32
      %47 = vector.broadcast %cst_23 : f32 to vector<8x128xf32>
      %c0_24 = arith.constant 0 : index
      %c0_25 = arith.constant 0 : index
      %48 = vector.load %arg6[%c0_24, %c0_25] : memref<8x128xf32, #tpu.memory_space<vmem>>, vector<8x128xf32>
      tpu.vector_store %arg6[%c0_24, %c0_25], %47 {strides = array<i32>} : memref<8x128xf32, #tpu.memory_space<vmem>>, vector<8x128xf32>,
    } else {
    }
    %c32_i32 = arith.constant 32 : i32
    %3 = arith.muli %arg0, %c32_i32 : i32
    %4 = tpu.assume_multiple %3, 32 : i32
    %5 = arith.index_cast %4 : i32 to index
    %c0 = arith.constant 0 : index
    %6 = vector.load %arg2[%5, %c0] : memref<32x1xi32, #tpu.memory_space<vmem>>, vector<32x1xi32>
    %c0_1 = arith.constant 0 : index
    %c0_2 = arith.constant 0 : index
    %7 = vector.load %arg1[%c0_1, %c0_2] : memref<32x32xf32, #tpu.memory_space<vmem>>, vector<32x32xf32>
    %c0_3 = arith.constant 0 : index
    %c0_4 = arith.constant 0 : index
    %8 = vector.load %arg3[%c0_3, %c0_4] : memref<32x128xf32, #tpu.memory_space<vmem>>, vector<32x128xf32>
    %cst = arith.constant dense<0.000000e+00> : vector<32x128xf32>
    %9 = tpu.matmul %7, %8, %cst {dimension_numbers = #tpu.dot_dimension_numbers<[1], [0], [0], [1], [0, 0, 1, 1], [], []>} : vector<32x32xf32>, vector<32x128xf32>, vector<32x128xf32> -> vector<32x128xf32>
    %c0_5 = arith.constant 0 : index
    %c0_6 = arith.constant 0 : index
    %10 = vector.load %arg4[%c0_5, %c0_6] : memref<1x128xf32, #tpu.memory_space<vmem>>, vector<1x128xf32>
    %11 = vector.broadcast %10 : vector<1x128xf32> to vector<32x128xf32>
    %12 = arith.addf %9, %11 : vector<32x128xf32>
    %cst_7 = arith.constant dense<0xFF800000> : vector<32xf32>
    %13 = vector.multi_reduction <maximumf>, %12, %cst_7 [1] : vector<32x128xf32> to vector<32xf32>
    %14 = vector.shape_cast %13 : vector<32xf32> to vector<32x1xf32>
    %15 = vector.broadcast %14 : vector<32x1xf32> to vector<32x128xf32>
    %16 = arith.subf %12, %15 : vector<32x128xf32>
    %17 = math.exp %16 : vector<32x128xf32>
    %cst_8 = arith.constant dense<0.000000e+00> : vector<32xf32>
    %18 = vector.multi_reduction <add>, %17, %cst_8 [1] : vector<32x128xf32> to vector<32xf32>
    %19 = vector.shape_cast %18 : vector<32xf32> to vector<32x1xf32>
    %20 = math.log %19 : vector<32x1xf32>
    %21 = arith.addf %14, %20 : vector<32x1xf32>
    %22 = tpu.iota {dimensions = array<i32: 1>} : vector<32x128xi32>
    %23 = vector.broadcast %6 : vector<32x1xi32> to vector<32x128xi32>
    %24 = arith.cmpi eq, %22, %23 : vector<32x128xi32>
    %c-100_i32 = arith.constant -100 : i32
    %25 = vector.broadcast %c-100_i32 : i32 to vector<32x1xi32>
    %26 = arith.cmpi ne, %6, %25 : vector<32x1xi32>
    %27 = vector.broadcast %26 : vector<32x1xi1> to vector<32x128xi1>
    %28 = arith.andi %24, %27 : vector<32x128xi1>
    %29 = vector.broadcast %21 : vector<32x1xf32> to vector<32x128xf32>
    %30 = arith.subf %29, %12 : vector<32x128xf32>
    %cst_9 = arith.constant 0.000000e+00 : f32
    %31 = vector.broadcast %cst_9 : f32 to vector<32x128xf32>
    %32 = arith.select %28, %30, %31 : vector<32x128xi1>, vector<32x128xf32>
    %c0_10 = arith.constant 0 : index
    %c0_11 = arith.constant 0 : index
    %33 = vector.load %arg5[%c0_10, %c0_11] : memref<8x128xf32, #tpu.memory_space<vmem>>, vector<8x128xf32>
    %34 = vector.shape_cast %32 : vector<32x128xf32> to vector<4x8x128xf32>
    %cst_12 = arith.constant dense<0.000000e+00> : vector<8x128xf32>
    %35 = vector.multi_reduction <add>, %34, %cst_12 [0] : vector<4x8x128xf32> to vector<8x128xf32>
    %36 = arith.addf %33, %35 : vector<8x128xf32>
    %c0_13 = arith.constant 0 : index
    %c0_14 = arith.constant 0 : index
    %37 = vector.load %arg5[%c0_13, %c0_14] : memref<8x128xf32, #tpu.memory_space<vmem>>, vector<8x128xf32>
    tpu.vector_store %arg5[%c0_13, %c0_14], %36 {strides = array<i32>} : memref<8x128xf32, #tpu.memory_space<vmem>>, vector<8x128xf32>,
    %c0_15 = arith.constant 0 : index
    %c0_16 = arith.constant 0 : index
    %38 = vector.load %arg6[%c0_15, %c0_16] : memref<8x128xf32, #tpu.memory_space<vmem>>, vector<8x128xf32>
    %39 = arith.extui %28 : vector<32x128xi1> to vector<32x128xi32>
    %40 = arith.sitofp %39 : vector<32x128xi32> to vector<32x128xf32>
    %41 = vector.shape_cast %40 : vector<32x128xf32> to vector<4x8x128xf32>
    %cst_17 = arith.constant dense<0.000000e+00> : vector<8x128xf32>
    %42 = vector.multi_reduction <add>, %41, %cst_17 [0] : vector<4x8x128xf32> to vector<8x128xf32>
    %43 = arith.addf %38, %42 : vector<8x128xf32>
    %c0_18 = arith.constant 0 : index
    %c0_19 = arith.constant 0 : index
    %44 = vector.load %arg6[%c0_18, %c0_19] : memref<8x128xf32, #tpu.memory_space<vmem>>, vector<8x128xf32>
    tpu.vector_store %arg6[%c0_18, %c0_19], %43 {strides = array<i32>} : memref<8x128xf32, #tpu.memory_space<vmem>>, vector<8x128xf32>,
    return
  }
  func.func @transform_0(%arg0: i32) -> (i32, i32) {
    %c0_i32 = arith.constant 0 : i32
    %c0_i32_0 = arith.constant 0 : i32
    return %arg0, %c0_i32 : i32, i32
  }
  func.func @transform_1(%arg0: i32) -> (i32, i32) {
    %c0_i32 = arith.constant 0 : i32
    %c0_i32_0 = arith.constant 0 : i32
    %c0_i32_1 = arith.constant 0 : i32
    return %c0_i32, %c0_i32_0 : i32, i32
  }
  func.func @transform_2(%arg0: i32) -> (i32, i32) {
    %c0_i32 = arith.constant 0 : i32
    %c0_i32_0 = arith.constant 0 : i32
    %c0_i32_1 = arith.constant 0 : i32
    return %c0_i32, %c0_i32_0 : i32, i32
  }
  func.func @transform_3(%arg0: i32) -> (i32, i32) {
    %c0_i32 = arith.constant 0 : i32
    %c0_i32_0 = arith.constant 0 : i32
    %c0_i32_1 = arith.constant 0 : i32
    return %c0_i32, %c0_i32_0 : i32, i32
  }
  func.func @transform_4(%arg0: i32) -> (i32, i32) {
    %c0_i32 = arith.constant 0 : i32
    %c0_i32_0 = arith.constant 0 : i32
    %c0_i32_1 = arith.constant 0 : i32
    return %c0_i32, %c0_i32_0 : i32, i32
  }
  func.func @transform_5(%arg0: i32) -> (i32, i32) {
    %c0_i32 = arith.constant 0 : i32
    %c0_i32_0 = arith.constant 0 : i32
    %c0_i32_1 = arith.constant 0 : i32
    return %c0_i32, %c0_i32_0 : i32, i32
  }
}

</mosaic_0001>

<llo_original>
// kernel: tpu_custom_call.1
$region0: #{tpu_custom_call.1}
  #allocation0 [shape = 'u32[]', space=smem, size = 0x4, offset = 0x4, fixed_abs, tag = 'smem constant byte address 0x4 - core index']
  #allocation1 [shape = 'u32[144,128]{1,0:T(1,128)}', space=vmem, size = 0x12000, scoped, tag = 'internal scratch']
  %s0 = inlined_call_operand.vmem [shape: f32[32,32], index: 0, kind: input, shape index: {}]
  %s1 = inlined_call_operand.vmem [shape: s32[32,1], index: 1, kind: input, shape index: {}]
  %s2 = inlined_call_operand.hbm [shape: f32[32,128], index: 2, kind: input, shape index: {}]
  %s3 = inlined_call_operand.vmem [shape: f32[1,128], index: 3, kind: input, shape index: {}]
  %s4 = inlined_call_operand.hbm [shape: f32[8,128], index: 4, kind: output, shape index: {0}]
  %s5 = inlined_call_operand.hbm [shape: f32[8,128], index: 5, kind: output, shape index: {1}]
  %6 = xla_tuple %s4, %s5
  %s7 = sld [smem:[#allocation0]]
  $region42: #{tpu_custom_call.1} parent=0
    _
  %s9 = ssub.s32 1, %s7
  %s10 = scalar_select 0, %s9, %s7
  $region1: #{tpu_custom_call.1} parent=0
    #allocation2 [shape = 'u8[16384]{0}', space=vmem, size = 0x4000, scoped, tag = 'input window, operand 2, single buffered']
    #allocation3 [shape = 's32[1]{0}', space=sflag, size = 0x4, scoped, tag = 'scoped memory for tpu_custom_call.1']
    #allocation4 [shape = 's32[1]{0}', space=sflag, size = 0x4, scoped, tag = 'scoped memory for tpu_custom_call.1']
    #allocation5 [shape = 'u8[4096]{0}', space=vmem, size = 0x1000, scoped, tag = 'output window, operand 0, single buffered']
    #allocation6 [shape = 'u8[4096]{0}', space=vmem, size = 0x1000, scoped, tag = 'output window, operand 1, single buffered']
    #allocation7 [shape = 's32[1]{0}', space=sflag, size = 0x4, scoped, tag = 'scoped memory for tpu_custom_call.1']
    %11 = vsyncpa [#allocation3], 0
    %12 = vsyncpa [#allocation4], 0
    %13 = vsyncpa [#allocation7], 0
    // Predicated region
    $region2: #{tpu_custom_call.1} parent=1 // pred_check
      _
    $region3: #{tpu_custom_call.1} parent=1 // pred_check_branch
      %15 = sbr.rel (0) target = $region5
    $region4: #{tpu_custom_call.1} parent=1 // pred_region
      _
    $region5: #{tpu_custom_call.1} parent=1 // pred_fallthru
      _
    // Predicated region
    $region6: #{tpu_custom_call.1} parent=1 // pred_check
      _
    $region7: #{tpu_custom_call.1} parent=1 // pred_check_branch
      %17 = sbr.rel (0) target = $region9
    $region8: #{tpu_custom_call.1} parent=1 // pred_region
      _
    $region9: #{tpu_custom_call.1} parent=1 // pred_fallthru
      _
    // Predicated region
    $region10: #{tpu_custom_call.1} parent=1 // pred_check
      _
    $region11: #{tpu_custom_call.1} parent=1 // pred_check_branch
      %19 = sbr.rel (0) target = $region13
    $region12: #{tpu_custom_call.1} parent=1 // pred_region
      %s21 = ssub.s32 512, 512
      %22 = vsyncadd [#allocation3], %s21
      %s23 = sshll.u32 [#allocation2], 4
      %s24 = int_to_ptr.vmem [resolvable:$true] %s23
      %29 = dma.hbm_to_vmem [thread:$0]  %s2, 512, %s24, [#allocation3], 128, 128, 8
    $region13: #{tpu_custom_call.1} parent=1 // pred_fallthru
      _
    // Predicated region
    $region14: #{tpu_custom_call.1} parent=1 // pred_check
      _
    $region15: #{tpu_custom_call.1} parent=1 // pred_check_branch
      %31 = sbr.rel (0) target = $region17
    $region16: #{tpu_custom_call.1} parent=1 // pred_region
      _
    $region17: #{tpu_custom_call.1} parent=1 // pred_fallthru
      _
    // Predicated region
    $region18: #{tpu_custom_call.1} parent=1 // pred_check
      _
    $region19: #{tpu_custom_call.1} parent=1 // pred_check_branch
      %33 = sbr.rel (0) target = $region21
    $region20: #{tpu_custom_call.1} parent=1 // pred_region
      %34 = dma.done [#allocation3], 512
    $region21: #{tpu_custom_call.1} parent=1 // pred_fallthru
      _
    %p35 = scmp.eq.s32.totalorder 0, 0
    // Predicated region
    $region22: #{tpu_custom_call.1} parent=1 // pred_check
      %p36 = pneg %p35
    $region23: #{tpu_custom_call.1} parent=1 // pred_check_branch
      %38 = sbr.rel (%p36) target = $region25
    $region24: #{tpu_custom_call.1} parent=1 // pred_region
      %39 = vst [vmem:[#allocation5] sm:$0xff] 0.0
      %40 = vst [vmem:[#allocation6] sm:$0xff] 0.0
    $region25: #{tpu_custom_call.1} parent=1 // pred_fallthru
      _
    %s41 = smul.u32 0, 32
    %s42 = scalar_lea.vmem %s1, %s41
    %v43 = vld [vmem:[%s42] sm:$0xff]
    %v44 = vld [vmem:[%s42 + $0x8] sm:$0xff]
    %v45 = vld [vmem:[%s42 + $0x10] sm:$0xff]
    %v46 = vld [vmem:[%s42 + $0x18] sm:$0xff]
    %v47 = vld [vmem:[%s0] sm:$0xff]
    %v48 = vld [vmem:[%s0 + $0x8] sm:$0xff]
    %v49 = vld [vmem:[%s0 + $0x10] sm:$0xff]
    %v50 = vld [vmem:[%s0 + $0x18] sm:$0xff]
    %v51 = vld [vmem:[#allocation2] sm:$0xff]
    %v52 = vld [vmem:[#allocation2 + $0x8] sm:$0xff]
    %v53 = vld [vmem:[#allocation2 + $0x10] sm:$0xff]
    %v54 = vld [vmem:[#allocation2 + $0x18] sm:$0xff]
    %v55 = vld [vmem:[%s3] sm:$0x1]
    %v57 = vlaneseq
    %v58 = vshrl.u32 %v57, 7
    %v59 = vsub.s32 0, %v58
    %v60 = vrot.slane %v55, %v59
    %vm62 = vcmask 261120
    %v64 = vsel %vm62, %v47, 0
    %v67 = vsel %vm62, %v48, 0
    %v70 = vsel %vm62, %v49, 0
    %v73 = vsel %vm62, %v50, 0
    %75 = vmatprep.subr.mxu0 0.0
    %76 = vmatpush1.msra.mxu0 0.0
    %77 = vmatprep.subr.mxu0 0.0
    %78 = vmatpush1.msra.mxu0 0.0
    %79 = vmatprep.subr.mxu0 0.0
    %80 = vmatpush1.msra.mxu0 0.0
    %81 = vmatprep.subr.mxu0 0.0
    %82 = vmatpush1.msra.mxu0 0.0
    %83 = vmatprep.subr.mxu0 0.0
    %84 = vmatpush1.msra.mxu0 0.0
    %85 = vmatprep.subr.mxu0 0.0
    %86 = vmatpush1.msra.mxu0 0.0
    %87 = vmatprep.subr.mxu0 0.0
    %88 = vmatpush1.msra.mxu0 0.0
    %89 = vmatprep.subr.mxu0 0.0
    %90 = vmatpush1.msra.mxu0 0.0
    %91 = vmatprep.subr.mxu0 0.0
    %92 = vmatpush1.msra.mxu0 0.0
    %93 = vmatprep.subr.mxu0 0.0
    %94 = vmatpush1.msra.mxu0 0.0
    %95 = vmatprep.subr.mxu0 0.0
    %96 = vmatpush1.msra.mxu0 0.0
    %97 = vmatprep.subr.mxu0 0.0
    %98 = vmatpush1.msra.mxu0 0.0
    %99 = vmatprep.subr.mxu0 0.0
    %100 = vmatpush1.msra.mxu0 %v54
    %101 = vmatprep.subr.mxu0 0.0
    %102 = vmatpush1.msra.mxu0 %v53
    %103 = vmatprep.subr.mxu0 0.0
    %104 = vmatpush1.msra.mxu0 %v52
    %105 = vmatprep.subr.mxu0 0.0
    %106 = vmatpush1.msra.mxu0 %v51
    %107 = vmatprep.subr.mxu0 0.0
    %108 = vmatpush2.msra.mxu0 0.0
    %109 = vmatprep.subr.mxu0 0.0
    %110 = vmatpush2.msra.mxu0 0.0
    %111 = vmatprep.subr.mxu0 0.0
    %112 = vmatpush2.msra.mxu0 0.0
    %113 = vmatprep.subr.mxu0 0.0
    %114 = vmatpush2.msra.mxu0 0.0
    %115 = vmatprep.subr.mxu0 0.0
    %116 = vmatpush2.msra.mxu0 0.0
    %117 = vmatprep.subr.mxu0 0.0
    %118 = vmatpush2.msra.mxu0 0.0
    %119 = vmatprep.subr.mxu0 0.0
    %120 = vmatpush2.msra.mxu0 0.0
    %121 = vmatprep.subr.mxu0 0.0
    %122 = vmatpush2.msra.mxu0 0.0
    %123 = vmatprep.subr.mxu0 0.0
    %124 = vmatpush2.msra.mxu0 0.0
    %125 = vmatprep.subr.mxu0 0.0
    %126 = vmatpush2.msra.mxu0 0.0
    %127 = vmatprep.subr.mxu0 0.0
    %128 = vmatpush2.msra.mxu0 0.0
    %129 = vmatprep.subr.mxu0 0.0
    %130 = vmatpush2.msra.mxu0 0.0
    %131 = vmatprep.subr.mxu0 0.0
    %132 = vmatpush2.msra.mxu0 0.0
    %133 = vmatprep.subr.mxu0 0.0
    %134 = vmatpush2.msra.mxu0 0.0
    %135 = vmatprep.subr.mxu0 0.0
    %136 = vmatpush2.msra.mxu0 0.0
    %137 = vmatprep.subr.mxu0 0.0
    %138 = vmatpush2.msra.mxu0 0.0
    %139 = vmatprep.mubr.f32.mxu0 0.0
    %140 = vmatmul.mubr.f32.gmra.mxu0 %v64
    %v141 = vpop.f32.mrf.mxu0
    %v142 = vadd.f32 %v60, %v141
    %v143 = vpop.f32.mrf.mxu0
    %144 = vmatprep.mubr.f32.mxu0 0.0
    %145 = vmatmul.mubr.f32.gmra.mxu0 %v67
    %v146 = vpop.f32.mrf.mxu0
    %v147 = vadd.f32 %v60, %v146
    %v148 = vpop.f32.mrf.mxu0
    %149 = vmatprep.mubr.f32.mxu0 0.0
    %150 = vmatmul.mubr.f32.gmra.mxu0 %v70
    %v151 = vpop.f32.mrf.mxu0
    %v152 = vadd.f32 %v60, %v151
    %v153 = vpop.f32.mrf.mxu0
    %154 = vmatprep.mubr.f32.mxu0 0.0
    %155 = vmatmul.mubr.f32.gmra.mxu0 %v73
    %v156 = vpop.f32.mrf.mxu0
    %v157 = vadd.f32 %v60, %v156
    %v158 = vpop.f32.mrf.mxu0
    %159 = vdwg.mxu0
    %160 = vmax.xlane.f32.xlu0 %v142
    %v161 = vpop.xlane.xlu0 %160
    %162 = vmax.xlane.f32.xlu0 %v147
    %v163 = vpop.xlane.xlu0 %162
    %164 = vmax.xlane.f32.xlu0 %v152
    %v165 = vpop.xlane.xlu0 %164
    %166 = vmax.xlane.f32.xlu0 %v157
    %v167 = vpop.xlane.xlu0 %166
    %v168 = vsub.f32 %v142, %v161
    %v169 = vsub.f32 %v147, %v163
    %v170 = vsub.f32 %v152, %v165
    %v171 = vsub.f32 %v157, %v167
    %v172 = vmul.f32 %v168, 1.442695
    %v173 = vpow.pop %v172
    %v174 = vmul.f32 %v169, 1.442695
    %v175 = vpow.pop %v174
    %v176 = vmul.f32 %v170, 1.442695
    %v177 = vpow.pop %v176
    %v178 = vmul.f32 %v171, 1.442695
    %v179 = vpow.pop %v178
    %180 = vadd.xlane.f32.xlu0 %v173
    %v181 = vpop.xlane.xlu0 %180
    %182 = vadd.xlane.f32.xlu0 %v175
    %v183 = vpop.xlane.xlu0 %182
    %184 = vadd.xlane.f32.xlu0 %v177
    %v185 = vpop.xlane.xlu0 %184
    %186 = vadd.xlane.f32.xlu0 %v179
    %v187 = vpop.xlane.xlu0 %186
    %v188 = vlog2.pop %v181
    %v189 = vmul.f32 %v188, 0.6931472
    %v190 = vlog2.pop %v183
    %v191 = vmul.f32 %v190, 0.6931472
    %v192 = vlog2.pop %v185
    %v193 = vmul.f32 %v192, 0.6931472
    %v194 = vlog2.pop %v187
    %v195 = vmul.f32 %v194, 0.6931472
    %v196 = vadd.f32 %v161, %v189
    %v197 = vadd.f32 %v163, %v191
    %v198 = vadd.f32 %v165, %v193
    %v199 = vadd.f32 %v167, %v195
    %v200 = vlaneseq
    %v201 = vand.u32 %v200, 127
    %202 = vset.pattern.permute.xlu0 0
    %203 = vperm.xlu0 %202, %v43
    %v204 = vpop.permute.xlu0 %203
    %205 = vset.pattern.permute.xlu0 0
    %206 = vperm.xlu0 %205, %v44
    %v207 = vpop.permute.xlu0 %206
    %208 = vset.pattern.permute.xlu0 0
    %209 = vperm.xlu0 %208, %v45
    %v210 = vpop.permute.xlu0 %209
    %211 = vset.pattern.permute.xlu0 0
    %212 = vperm.xlu0 %211, %v46
    %v213 = vpop.permute.xlu0 %212
    %vm214 = vcmp.eq.s32.totalorder %v201, %v204
    %vm215 = vcmp.eq.s32.totalorder %v201, %v207
    %vm216 = vcmp.eq.s32.totalorder %v201, %v210
    %vm217 = vcmp.eq.s32.totalorder %v201, %v213
    %vm218 = vcmp.ne.s32.totalorder %v43, 4294967196
    %vm219 = vcmp.ne.s32.totalorder %v44, 4294967196
    %vm220 = vcmp.ne.s32.totalorder %v45, 4294967196
    %vm221 = vcmp.ne.s32.totalorder %v46, 4294967196
    %v222 = vsel %vm218, 1, 0
    %v223 = vsel %vm219, 1, 0
    %v224 = vsel %vm220, 1, 0
    %v225 = vsel %vm221, 1, 0
    %226 = vset.pattern.permute.xlu0 0
    %227 = vperm.xlu0 %226, %v222
    %v228 = vpop.permute.xlu0 %227
    %229 = vset.pattern.permute.xlu0 0
    %230 = vperm.xlu0 %229, %v223
    %v231 = vpop.permute.xlu0 %230
    %232 = vset.pattern.permute.xlu0 0
    %233 = vperm.xlu0 %232, %v224
    %v234 = vpop.permute.xlu0 %233
    %235 = vset.pattern.permute.xlu0 0
    %236 = vperm.xlu0 %235, %v225
    %v237 = vpop.permute.xlu0 %236
    %vm238 = vcmp.eq.s32.totalorder %v228, 1
    %vm239 = vcmp.eq.s32.totalorder %v231, 1
    %vm240 = vcmp.eq.s32.totalorder %v234, 1
    %vm241 = vcmp.eq.s32.totalorder %v237, 1
    %vm242 = vmand %vm214, %vm238
    %vm243 = vmand %vm215, %vm239
    %vm244 = vmand %vm216, %vm240
    %vm245 = vmand %vm217, %vm241
    %v246 = vsub.f32 %v196, %v142
    %v247 = vsub.f32 %v197, %v147
    %v248 = vsub.f32 %v198, %v152
    %v249 = vsub.f32 %v199, %v157
    %v250 = vsel %vm242, %v246, 0.0
    %v251 = vsel %vm243, %v247, 0.0
    %v252 = vsel %vm244, %v248, 0.0
    %v253 = vsel %vm245, %v249, 0.0
    %v254 = vld [vmem:[#allocation5] sm:$0xff]
    %v255 = vadd.f32 %v250, %v251
    %v256 = vadd.f32 %v255, %v252
    %v257 = vadd.f32 %v256, %v253
    %v258 = vadd.f32 %v254, %v257
    %259 = vst [vmem:[#allocation5] sm:$0xff] %v258
    %v260 = vld [vmem:[#allocation6] sm:$0xff]
    %v261 = vsel %vm242, 1, 0
    %v262 = vsel %vm243, 1, 0
    %v263 = vsel %vm244, 1, 0
    %v264 = vsel %vm245, 1, 0
    %v265 = vcvt.s32.f32 %v261
    %v266 = vcvt.s32.f32 %v262
    %v267 = vcvt.s32.f32 %v263
    %v268 = vcvt.s32.f32 %v264
    %v269 = vadd.f32 %v265, %v266
    %v270 = vadd.f32 %v269, %v267
    %v271 = vadd.f32 %v270, %v268
    %v272 = vadd.f32 %v260, %v271
    %273 = vst [vmem:[#allocation6] sm:$0xff] %v272
    // Predicated region
    $region26: #{tpu_custom_call.1} parent=1 // pred_check
      _
    $region27: #{tpu_custom_call.1} parent=1 // pred_check_branch
      %275 = sbr.rel (0) target = $region29
    $region28: #{tpu_custom_call.1} parent=1 // pred_region
      %s277 = ssub.s32 128, 128
      %278 = vsyncadd [#allocation4], %s277
      %s280 = sshll.u32 [#allocation5], 4
      %s281 = int_to_ptr.vmem [resolvable:$true] %s280
      %283 = dma.vmem_to_hbm [thread:$0]  %s281, 128, %s4, [#allocation4]
    $region29: #{tpu_custom_call.1} parent=1 // pred_fallthru
      _
    // Predicated region
    $region30: #{tpu_custom_call.1} parent=1 // pred_check
      _
    $region31: #{tpu_custom_call.1} parent=1 // pred_check_branch
      %285 = sbr.rel (0) target = $region33
    $region32: #{tpu_custom_call.1} parent=1 // pred_region
      %s287 = ssub.s32 128, 128
      %288 = vsyncadd [#allocation7], %s287
      %s290 = sshll.u32 [#allocation6], 4
      %s291 = int_to_ptr.vmem [resolvable:$true] %s290
      %293 = dma.vmem_to_hbm [thread:$0]  %s291, 128, %s5, [#allocation7]
    $region33: #{tpu_custom_call.1} parent=1 // pred_fallthru
      _
    // Predicated region
    $region34: #{tpu_custom_call.1} parent=1 // pred_check
      _
    $region35: #{tpu_custom_call.1} parent=1 // pred_check_branch
      %295 = sbr.rel (0) target = $region37
    $region36: #{tpu_custom_call.1} parent=1 // pred_region
      %296 = dma.done [#allocation4], 128
    $region37: #{tpu_custom_call.1} parent=1 // pred_fallthru
      _
    // Predicated region
    $region38: #{tpu_custom_call.1} parent=1 // pred_check
      _
    $region39: #{tpu_custom_call.1} parent=1 // pred_check_branch
      %298 = sbr.rel (0) target = $region41
    $region40: #{tpu_custom_call.1} parent=1 // pred_region
      %299 = dma.done [#allocation7], 128
    $region41: #{tpu_custom_call.1} parent=1 // pred_fallthru
      _
    %300 = vsyncpa [#allocation3], 1
    %301 = vsyncpa [#allocation4], 1
    %302 = vsyncpa [#allocation7], 1

</llo_original>
